<compile_context>
chip_gen: v5e
topology: v5e:2x2
jax: 0.10.0
libtpu: 0.0.40
codegen_flags: <defaults>
</compile_context>

<pallas_src>
import jax
import jax.numpy as jnp
from jax.experimental import pallas as pl
from jax.experimental.pallas import tpu as pltpu


# ----------------------------------------------------------------------------
# Pallas kernel: fused 3-layer MLP + softmax, K-tiled first matmul
# ----------------------------------------------------------------------------
def mlp_kernel(x_ref, w1_ref, b1_ref, w2_ref, b2_ref, w3_ref, b3_ref,
               o_ref, acc_ref):
    # Grid: (batch_tile i  [parallel],  k_tile k  [arbitrary, reduction])
    k = pl.program_id(1)

    @pl.when(k == 0)
    def _():
        acc_ref[...] = jnp.zeros_like(acc_ref)

    # Partial product of the first Linear: (tile_b, tile_k) @ (tile_k, 256)
    # bf16 operands, f32 accumulation.
    acc_ref[...] += jnp.dot(
        x_ref[...], w1_ref[...], preferred_element_type=jnp.float32
    )

    @pl.when(k == pl.num_programs(1) - 1)
    def _():
        h1 = jnp.maximum(acc_ref[...] + b1_ref[...], 0.0)            # (tile_b, 256)
        h2 = jnp.maximum(
            jnp.dot(h1, w2_ref[...], preferred_element_type=jnp.float32)
            + b2_ref[...],
            0.0,
        )                                                            # (tile_b, 64)
        logits = (
            jnp.dot(h2, w3_ref[...], preferred_element_type=jnp.float32)
            + b3_ref[...]
        )                                                            # (tile_b, L)
        m = jnp.max(logits, axis=-1, keepdims=True)
        e = jnp.exp(logits - m)
        o_ref[...] = e / jnp.sum(e, axis=-1, keepdims=True)


# ----------------------------------------------------------------------------
# Wrapper
# ----------------------------------------------------------------------------
def _round_up(x, m):
    return (x + m - 1) // m * m


def mlp_forward(tokens, params):
    """tokens: (B, fixed_len) int32 -> softmax probabilities (B, label_size)."""
    # Embedding lookup + flatten (x.view(B, -1) in the PyTorch module).
    # TODO(synk): the data-dependent embedding gather stays in XLA (jnp.take);
    # no clean tiled BlockSpec form is worth it at this size.
    emb = jnp.take(params["embedding"], tokens, axis=0)    # (B, fixed_len, D)
    B = tokens.shape[0]
    x = emb.reshape(B, -1)                                 # (B, K)
    K = x.shape[1]

    w1, b1 = params["w1"], params["b1"]
    w2, b2 = params["w2"], params["b2"]
    w3, b3 = params["w3"], params["b3"]
    H1, H2, L = w1.shape[1], w2.shape[1], w3.shape[1]

    # ---- tile choices (v7x-safe VMEM budget: small, lane-aligned blocks) ----
    tile_b = min(128, _round_up(B, 8))          # sublane-aligned batch tile
    Bp = _round_up(B, tile_b)
    tile_k = K if K <= 512 else 512             # K-reduction tile (mult. of 128)
    Kp = _round_up(K, tile_k)

    # Pad batch / K with zeros (zero rows & zero weight rows contribute nothing)
    # and cast the big-matmul operands to bf16 for the MXU.
    xb = jnp.zeros((Bp, Kp), jnp.bfloat16).at[:B, :K].set(x.astype(jnp.bfloat16))
    w1b = jnp.zeros((Kp, H1), jnp.bfloat16).at[:K, :].set(w1.astype(jnp.bfloat16))

    grid = (Bp // tile_b, Kp // tile_k)

    out = pl.pallas_call(
        mlp_kernel,
        out_shape=jax.ShapeDtypeStruct((Bp, L), jnp.float32),
        grid_spec=pltpu.PrefetchScalarGridSpec(
            num_scalar_prefetch=0,
            grid=grid,
            in_specs=[
                pl.BlockSpec((tile_b, tile_k), lambda i, k: (i, k)),   # x
                pl.BlockSpec((tile_k, H1), lambda i, k: (k, 0)),       # W1
                pl.BlockSpec((1, H1), lambda i, k: (0, 0)),            # b1
                pl.BlockSpec((H1, H2), lambda i, k: (0, 0)),           # W2
                pl.BlockSpec((1, H2), lambda i, k: (0, 0)),            # b2
                pl.BlockSpec((H2, L), lambda i, k: (0, 0)),            # W3
                pl.BlockSpec((1, L), lambda i, k: (0, 0)),             # b3
            ],
            out_specs=pl.BlockSpec((tile_b, L), lambda i, k: (i, 0)),
            scratch_shapes=[pltpu.VMEM((tile_b, H1), jnp.float32)],    # acc
        ),
        compiler_params=pltpu.CompilerParams(
            dimension_semantics=("parallel", "arbitrary"),
            vmem_limit_bytes=64 * 1024 * 1024,
        ),
    )(
        xb, w1b,
        b1.reshape(1, H1),
        w2, b2.reshape(1, H2),
        w3, b3.reshape(1, L),
    )
    return out[:B]


# ----------------------------------------------------------------------------
# Deterministic parameter initialization (synthetic weights, no checkpoint)
# Weights stored as (in, out), i.e. y = x @ W + b (same math as nn.Linear).
# ----------------------------------------------------------------------------
def init_params(key, vocab_size, word_dim, fixed_len, label_size):
    def u(k, shape, scale=0.1):
        return jax.random.uniform(k, shape, jnp.float32, -scale, scale)

    k_emb, k_w1, k_b1, k_w2, k_b2, k_w3, k_b3 = jax.random.split(key, 7)
    input_size = fixed_len * word_dim
    return {
        "embedding": u(k_emb, (vocab_size, word_dim), 1.0),
        "w1": u(k_w1, (input_size, 256)),
        "b1": u(k_b1, (256,)),
        "w2": u(k_w2, (256, 64)),
        "b2": u(k_b2, (64,)),
        "w3": u(k_w3, (64, label_size)),
        "b3": u(k_b3, (label_size,)),
    }


if __name__ == "__main__":
    B = 2
    fixed_len = 8
    word_dim = 32
    vocab_size = 50
    label_size = 4

    key = jax.random.PRNGKey(0)
    k_params, k_tokens = jax.random.split(key)
    params = init_params(k_params, vocab_size, word_dim, fixed_len, label_size)
    tokens = jax.random.randint(
        k_tokens, (B, fixed_len), 0, vocab_size, dtype=jnp.int32
    )

    out = jax.block_until_ready(mlp_forward(tokens, params))

    assert out.shape == (B, label_size), out.shape
    row_sums = jnp.sum(out, axis=1)
    assert bool(jnp.all(jnp.abs(row_sums - 1.0) < 1e-3)), row_sums
    assert bool(jnp.all(out >= 0.0))
    print("KERNEL_OK")
</pallas_src>

<mosaic_0001>
module attributes {stable_mosaic.version = 11 : i64} {
  func.func @mlp_kernel(%arg0: i32, %arg1: i32, %arg2: memref<8x256xbf16, #tpu.memory_space<vmem>>, %arg3: memref<256x256xbf16, #tpu.memory_space<vmem>>, %arg4: memref<1x256xf32, #tpu.memory_space<vmem>>, %arg5: memref<256x64xf32, #tpu.memory_space<vmem>>, %arg6: memref<1x64xf32, #tpu.memory_space<vmem>>, %arg7: memref<64x4xf32, #tpu.memory_space<vmem>>, %arg8: memref<1x4xf32, #tpu.memory_space<vmem>>, %arg9: memref<8x4xf32, #tpu.memory_space<vmem>>, %arg10: memref<8x256xf32, #tpu.memory_space<vmem>>) attributes {dimension_semantics = [#tpu.dimension_semantics<parallel>, #tpu.dimension_semantics<arbitrary>], iteration_bounds = array<i64: 1, 1>, scalar_prefetch = 0 : i64, scratch_operands = 1 : i64, tpu.core_type = #tpu.core_type<tc>, window_params = [{transform_indices = @transform_0, window_bounds = array<i64: 8, 256>}, {transform_indices = @transform_1, window_bounds = array<i64: 256, 256>}, {pipeline_mode = #tpu.pipeline_mode<synchronous>, transform_indices = @transform_2, window_bounds = array<i64: 1, 256>}, {pipeline_mode = #tpu.pipeline_mode<synchronous>, transform_indices = @transform_3, window_bounds = array<i64: 256, 64>}, {pipeline_mode = #tpu.pipeline_mode<synchronous>, transform_indices = @transform_4, window_bounds = array<i64: 1, 64>}, {pipeline_mode = #tpu.pipeline_mode<synchronous>, transform_indices = @transform_5, window_bounds = array<i64: 64, 4>}, {pipeline_mode = #tpu.pipeline_mode<synchronous>, transform_indices = @transform_6, window_bounds = array<i64: 1, 4>}, {transform_indices = @transform_7, window_bounds = array<i64: 8, 4>}]} {
    %c0_i32 = arith.constant 0 : i32
    %0 = arith.cmpi eq, %arg1, %c0_i32 : i32
    %1 = arith.extui %0 : i1 to i32
    %c0_i32_0 = arith.constant 0 : i32
    %2 = arith.cmpi ne, %1, %c0_i32_0 : i32
    scf.if %2 {
      %cst_10 = arith.constant 0.000000e+00 : f32
      %12 = vector.broadcast %cst_10 : f32 to vector<8x256xf32>
      %c0_11 = arith.constant 0 : index
      %c0_12 = arith.constant 0 : index
      %13 = vector.load %arg10[%c0_11, %c0_12] : memref<8x256xf32, #tpu.memory_space<vmem>>, vector<8x256xf32>
      tpu.vector_store %arg10[%c0_11, %c0_12], %12 {strides = array<i32>} : memref<8x256xf32, #tpu.memory_space<vmem>>, vector<8x256xf32>,
    } else {
    }
    %c0 = arith.constant 0 : index
    %c0_1 = arith.constant 0 : index
    %3 = vector.load %arg10[%c0, %c0_1] : memref<8x256xf32, #tpu.memory_space<vmem>>, vector<8x256xf32>
    %c0_2 = arith.constant 0 : index
    %c0_3 = arith.constant 0 : index
    %4 = vector.load %arg2[%c0_2, %c0_3] : memref<8x256xbf16, #tpu.memory_space<vmem>>, vector<8x256xbf16>
    %c0_4 = arith.constant 0 : index
    %c0_5 = arith.constant 0 : index
    %5 = vector.load %arg3[%c0_4, %c0_5] : memref<256x256xbf16, #tpu.memory_space<vmem>>, vector<256x256xbf16>
    %cst = arith.constant dense<0.000000e+00> : vector<8x256xf32>
    %6 = tpu.matmul %4, %5, %cst {dimension_numbers = #tpu.dot_dimension_numbers<[1], [0], [0], [1], [0, 0, 1, 1], [], []>} : vector<8x256xbf16>, vector<256x256xbf16>, vector<8x256xf32> -> vector<8x256xf32>
    %7 = arith.addf %3, %6 : vector<8x256xf32>
    %c0_6 = arith.constant 0 : index
    %c0_7 = arith.constant 0 : index
    %8 = vector.load %arg10[%c0_6, %c0_7] : memref<8x256xf32, #tpu.memory_space<vmem>>, vector<8x256xf32>
    tpu.vector_store %arg10[%c0_6, %c0_7], %7 {strides = array<i32>} : memref<8x256xf32, #tpu.memory_space<vmem>>, vector<8x256xf32>,
    %c0_i32_8 = arith.constant 0 : i32
    %9 = arith.cmpi eq, %arg1, %c0_i32_8 : i32
    %10 = arith.extui %9 : i1 to i32
    %c0_i32_9 = arith.constant 0 : i32
    %11 = arith.cmpi ne, %10, %c0_i32_9 : i32
    scf.if %11 {
      %c0_10 = arith.constant 0 : index
      %c0_11 = arith.constant 0 : index
      %12 = vector.load %arg10[%c0_10, %c0_11] : memref<8x256xf32, #tpu.memory_space<vmem>>, vector<8x256xf32>
      %c0_12 = arith.constant 0 : index
      %c0_13 = arith.constant 0 : index
      %13 = vector.load %arg4[%c0_12, %c0_13] : memref<1x256xf32, #tpu.memory_space<vmem>>, vector<1x256xf32>
      %14 = vector.broadcast %13 : vector<1x256xf32> to vector<8x256xf32>
      %15 = arith.addf %12, %14 : vector<8x256xf32>
      %cst_14 = arith.constant 0.000000e+00 : f32
      %16 = vector.broadcast %cst_14 : f32 to vector<8x256xf32>
      %17 = arith.maximumf %15, %16 : vector<8x256xf32>
      %c0_15 = arith.constant 0 : index
      %c0_16 = arith.constant 0 : index
      %18 = vector.load %arg5[%c0_15, %c0_16] : memref<256x64xf32, #tpu.memory_space<vmem>>, vector<256x64xf32>
      %cst_17 = arith.constant dense<0.000000e+00> : vector<8x64xf32>
      %19 = tpu.matmul %17, %18, %cst_17 {dimension_numbers = #tpu.dot_dimension_numbers<[1], [0], [0], [1], [0, 0, 1, 1], [], []>} : vector<8x256xf32>, vector<256x64xf32>, vector<8x64xf32> -> vector<8x64xf32>
      %c0_18 = arith.constant 0 : index
      %c0_19 = arith.constant 0 : index
      %20 = vector.load %arg6[%c0_18, %c0_19] : memref<1x64xf32, #tpu.memory_space<vmem>>, vector<1x64xf32>
      %21 = vector.broadcast %20 : vector<1x64xf32> to vector<8x64xf32>
      %22 = arith.addf %19, %21 : vector<8x64xf32>
      %cst_20 = arith.constant 0.000000e+00 : f32
      %23 = vector.broadcast %cst_20 : f32 to vector<8x64xf32>
      %24 = arith.maximumf %22, %23 : vector<8x64xf32>
      %c0_21 = arith.constant 0 : index
      %c0_22 = arith.constant 0 : index
      %25 = vector.load %arg7[%c0_21, %c0_22] : memref<64x4xf32, #tpu.memory_space<vmem>>, vector<64x4xf32>
      %cst_23 = arith.constant dense<0.000000e+00> : vector<8x4xf32>
      %26 = tpu.matmul %24, %25, %cst_23 {dimension_numbers = #tpu.dot_dimension_numbers<[1], [0], [0], [1], [0, 0, 1, 1], [], []>} : vector<8x64xf32>, vector<64x4xf32>, vector<8x4xf32> -> vector<8x4xf32>
      %c0_24 = arith.constant 0 : index
      %c0_25 = arith.constant 0 : index
      %27 = vector.load %arg8[%c0_24, %c0_25] : memref<1x4xf32, #tpu.memory_space<vmem>>, vector<1x4xf32>
      %28 = vector.broadcast %27 : vector<1x4xf32> to vector<8x4xf32>
      %29 = arith.addf %26, %28 : vector<8x4xf32>
      %cst_26 = arith.constant dense<0xFF800000> : vector<8xf32>
      %30 = vector.multi_reduction <maximumf>, %29, %cst_26 [1] : vector<8x4xf32> to vector<8xf32>
      %31 = vector.shape_cast %30 : vector<8xf32> to vector<8x1xf32>
      %32 = vector.broadcast %31 : vector<8x1xf32> to vector<8x4xf32>
      %33 = arith.subf %29, %32 : vector<8x4xf32>
      %34 = math.exp %33 : vector<8x4xf32>
      %cst_27 = arith.constant dense<0.000000e+00> : vector<8xf32>
      %35 = vector.multi_reduction <add>, %34, %cst_27 [1] : vector<8x4xf32> to vector<8xf32>
      %36 = vector.shape_cast %35 : vector<8xf32> to vector<8x1xf32>
      %37 = vector.broadcast %36 : vector<8x1xf32> to vector<8x4xf32>
      %38 = arith.divf %34, %37 : vector<8x4xf32>
      %c0_28 = arith.constant 0 : index
      %c0_29 = arith.constant 0 : index
      %39 = vector.load %arg9[%c0_28, %c0_29] : memref<8x4xf32, #tpu.memory_space<vmem>>, vector<8x4xf32>
      tpu.vector_store %arg9[%c0_28, %c0_29], %38 {strides = array<i32>} : memref<8x4xf32, #tpu.memory_space<vmem>>, vector<8x4xf32>,
    } else {
    }
    return
  }
  func.func @transform_0(%arg0: i32, %arg1: i32) -> (i32, i32) {
    %c0_i32 = arith.constant 0 : i32
    return %arg0, %arg1 : i32, i32
  }
  func.func @transform_1(%arg0: i32, %arg1: i32) -> (i32, i32) {
    %c0_i32 = arith.constant 0 : i32
    %c0_i32_0 = arith.constant 0 : i32
    return %arg1, %c0_i32 : i32, i32
  }
  func.func @transform_2(%arg0: i32, %arg1: i32) -> (i32, i32) {
    %c0_i32 = arith.constant 0 : i32
    %c0_i32_0 = arith.constant 0 : i32
    %c0_i32_1 = arith.constant 0 : i32
    return %c0_i32, %c0_i32_0 : i32, i32
  }
  func.func @transform_3(%arg0: i32, %arg1: i32) -> (i32, i32) {
    %c0_i32 = arith.constant 0 : i32
    %c0_i32_0 = arith.constant 0 : i32
    %c0_i32_1 = arith.constant 0 : i32
    return %c0_i32, %c0_i32_0 : i32, i32
  }
  func.func @transform_4(%arg0: i32, %arg1: i32) -> (i32, i32) {
    %c0_i32 = arith.constant 0 : i32
    %c0_i32_0 = arith.constant 0 : i32
    %c0_i32_1 = arith.constant 0 : i32
    return %c0_i32, %c0_i32_0 : i32, i32
  }
  func.func @transform_5(%arg0: i32, %arg1: i32) -> (i32, i32) {
    %c0_i32 = arith.constant 0 : i32
    %c0_i32_0 = arith.constant 0 : i32
    %c0_i32_1 = arith.constant 0 : i32
    return %c0_i32, %c0_i32_0 : i32, i32
  }
  func.func @transform_6(%arg0: i32, %arg1: i32) -> (i32, i32) {
    %c0_i32 = arith.constant 0 : i32
    %c0_i32_0 = arith.constant 0 : i32
    %c0_i32_1 = arith.constant 0 : i32
    return %c0_i32, %c0_i32_0 : i32, i32
  }
  func.func @transform_7(%arg0: i32, %arg1: i32) -> (i32, i32) {
    %c0_i32 = arith.constant 0 : i32
    %c0_i32_0 = arith.constant 0 : i32
    return %arg0, %c0_i32 : i32, i32
  }
}

</mosaic_0001>

<llo_original>
// kernel: tpu_custom_call.1
$region0: #{tpu_custom_call.1}
  #allocation0 [shape = 'u32[]', space=smem, size = 0x4, offset = 0x4, fixed_abs, tag = 'smem constant byte address 0x4 - core index']
  #allocation1 [shape = 'u32[72,128]{1,0:T(1,128)}', space=vmem, size = 0x9000, scoped, tag = 'internal scratch']
  #allocation2 [shape = 'f32[8,256]{1,0:T(8,128)}', space=vmem, size = 0x2000, scoped, tag = 'scratch operand']
  %s0 = inlined_call_operand.vmem [shape: bf16[8,256], index: 0, kind: input, shape index: {}]
  %s1 = inlined_call_operand.vmem [shape: bf16[256,256], index: 1, kind: input, shape index: {}]
  %s2 = inlined_call_operand.vmem [shape: f32[1,256], index: 2, kind: input, shape index: {}]
  %s3 = inlined_call_operand.vmem [shape: f32[256,64], index: 3, kind: input, shape index: {}]
  %s4 = inlined_call_operand.vmem [shape: f32[1,64], index: 4, kind: input, shape index: {}]
  %s5 = inlined_call_operand.vmem [shape: f32[64,4], index: 5, kind: input, shape index: {}]
  %s6 = inlined_call_operand.vmem [shape: f32[1,4], index: 6, kind: input, shape index: {}]
  %s7 = inlined_call_operand.vmem [shape: f32[8,4], index: 7, kind: output, shape index: {}]
  %s8 = sld [smem:[#allocation0]]
  $region46: #{tpu_custom_call.1} parent=0
    _
  %s10 = ssub.s32 1, %s8
  %s11 = scalar_select 0, %s10, %s8
  // Predicated region
  $region2: #{tpu_custom_call.1} parent=0 // pred_check
    _
  $region3: #{tpu_custom_call.1} parent=0 // pred_check_branch
    %13 = sbr.rel (0) target = $region5
  $region4: #{tpu_custom_call.1} parent=0 // pred_region
    _
  $region5: #{tpu_custom_call.1} parent=0 // pred_fallthru
    _
  // Predicated region
  $region6: #{tpu_custom_call.1} parent=0 // pred_check
    _
  $region7: #{tpu_custom_call.1} parent=0 // pred_check_branch
    %15 = sbr.rel (0) target = $region9
  $region8: #{tpu_custom_call.1} parent=0 // pred_region
    _
  $region9: #{tpu_custom_call.1} parent=0 // pred_fallthru
    _
  // Predicated region
  $region10: #{tpu_custom_call.1} parent=0 // pred_check
    _
  $region11: #{tpu_custom_call.1} parent=0 // pred_check_branch
    %17 = sbr.rel (0) target = $region13
  $region12: #{tpu_custom_call.1} parent=0 // pred_region
    _
  $region13: #{tpu_custom_call.1} parent=0 // pred_fallthru
    _
  // Predicated region
  $region14: #{tpu_custom_call.1} parent=0 // pred_check
    _
  $region15: #{tpu_custom_call.1} parent=0 // pred_check_branch
    %19 = sbr.rel (0) target = $region17
  $region16: #{tpu_custom_call.1} parent=0 // pred_region
    _
  $region17: #{tpu_custom_call.1} parent=0 // pred_fallthru
    _
  // Predicated region
  $region18: #{tpu_custom_call.1} parent=0 // pred_check
    _
  $region19: #{tpu_custom_call.1} parent=0 // pred_check_branch
    %21 = sbr.rel (0) target = $region21
  $region20: #{tpu_custom_call.1} parent=0 // pred_region
    _
  $region21: #{tpu_custom_call.1} parent=0 // pred_fallthru
    _
  // Predicated region
  $region22: #{tpu_custom_call.1} parent=0 // pred_check
    _
  $region23: #{tpu_custom_call.1} parent=0 // pred_check_branch
    %23 = sbr.rel (0) target = $region25
  $region24: #{tpu_custom_call.1} parent=0 // pred_region
    _
  $region25: #{tpu_custom_call.1} parent=0 // pred_fallthru
    _
  // Predicated region
  $region26: #{tpu_custom_call.1} parent=0 // pred_check
    _
  $region27: #{tpu_custom_call.1} parent=0 // pred_check_branch
    %25 = sbr.rel (0) target = $region29
  $region28: #{tpu_custom_call.1} parent=0 // pred_region
    _
  $region29: #{tpu_custom_call.1} parent=0 // pred_fallthru
    _
  %p26 = scmp.eq.s32.totalorder 0, 0
  // Predicated region
  $region30: #{tpu_custom_call.1} parent=0 // pred_check
    %p27 = pneg %p26
  $region31: #{tpu_custom_call.1} parent=0 // pred_check_branch
    %29 = sbr.rel (%p27) target = $region33
  $region32: #{tpu_custom_call.1} parent=0 // pred_region
    %30 = vst [vmem:[#allocation2] sm:$0xff] 0.0
    %31 = vst [vmem:[#allocation2 + $0x8] sm:$0xff] 0.0
  $region33: #{tpu_custom_call.1} parent=0 // pred_fallthru
    _
  %v32 = vld [vmem:[#allocation2] sm:$0xff]
  %v33 = vld [vmem:[#allocation2 + $0x8] sm:$0xff]
  %v34 = vld [vmem:[%s0] sm:$0xff]
  %v35 = vld [vmem:[%s1] sm:$0xff]
  %v36 = vld [vmem:[%s1 + $0x8] sm:$0xff]
  %v37 = vld [vmem:[%s1 + $0x10] sm:$0xff]
  %v38 = vld [vmem:[%s1 + $0x18] sm:$0xff]
  %v39 = vld [vmem:[%s1 + $0x20] sm:$0xff]
  %v40 = vld [vmem:[%s1 + $0x28] sm:$0xff]
  %v41 = vld [vmem:[%s1 + $0x30] sm:$0xff]
  %v42 = vld [vmem:[%s1 + $0x38] sm:$0xff]
  %v43 = vld [vmem:[%s1 + $0x40] sm:$0xff]
  %v44 = vld [vmem:[%s1 + $0x48] sm:$0xff]
  %v45 = vld [vmem:[%s1 + $0x50] sm:$0xff]
  %v46 = vld [vmem:[%s1 + $0x58] sm:$0xff]
  %v47 = vld [vmem:[%s1 + $0x60] sm:$0xff]
  %v48 = vld [vmem:[%s1 + $0x68] sm:$0xff]
  %v49 = vld [vmem:[%s1 + $0x70] sm:$0xff]
  %v50 = vld [vmem:[%s1 + $0x78] sm:$0xff]
  %v51 = vld [vmem:[%s1 + $0x80] sm:$0xff]
  %v52 = vld [vmem:[%s1 + $0x88] sm:$0xff]
  %v53 = vld [vmem:[%s1 + $0x90] sm:$0xff]
  %v54 = vld [vmem:[%s1 + $0x98] sm:$0xff]
  %v55 = vld [vmem:[%s1 + $0xa0] sm:$0xff]
  %v56 = vld [vmem:[%s1 + $0xa8] sm:$0xff]
  %v57 = vld [vmem:[%s1 + $0xb0] sm:$0xff]
  %v58 = vld [vmem:[%s1 + $0xb8] sm:$0xff]
  %v59 = vld [vmem:[%s1 + $0xc0] sm:$0xff]
  %v60 = vld [vmem:[%s1 + $0xc8] sm:$0xff]
  %v61 = vld [vmem:[%s1 + $0xd0] sm:$0xff]
  %v62 = vld [vmem:[%s1 + $0xd8] sm:$0xff]
  %v63 = vld [vmem:[%s1 + $0xe0] sm:$0xff]
  %v64 = vld [vmem:[%s1 + $0xe8] sm:$0xff]
  %v65 = vld [vmem:[%s1 + $0xf0] sm:$0xff]
  %v66 = vld [vmem:[%s1 + $0xf8] sm:$0xff]
  %v68 = vunpack.c.l.b16 %v34
  %v69 = vunpack.c.h.b16 %v34
  %v70 = vpack.c.b16 %v68, %v68
  %v71 = vpack.c.b16 %v69, %v69
  %v106 = vunpack.c.l.b16 %v35
  %v107 = vunpack.c.h.b16 %v35
  %v108 = vunpack.c.l.b16 %v36
  %v109 = vunpack.c.h.b16 %v36
  %v110 = vunpack.c.l.b16 %v37
  %v111 = vunpack.c.h.b16 %v37
  %v112 = vunpack.c.l.b16 %v38
  %v113 = vunpack.c.h.b16 %v38
  %v114 = vunpack.c.l.b16 %v39
  %v115 = vunpack.c.h.b16 %v39
  %v116 = vunpack.c.l.b16 %v40
  %v117 = vunpack.c.h.b16 %v40
  %v118 = vunpack.c.l.b16 %v41
  %v119 = vunpack.c.h.b16 %v41
  %v120 = vunpack.c.l.b16 %v42
  %v121 = vunpack.c.h.b16 %v42
  %v122 = vunpack.c.l.b16 %v43
  %v123 = vunpack.c.h.b16 %v43
  %v124 = vunpack.c.l.b16 %v44
  %v125 = vunpack.c.h.b16 %v44
  %v126 = vunpack.c.l.b16 %v45
  %v127 = vunpack.c.h.b16 %v45
  %v128 = vunpack.c.l.b16 %v46
  %v129 = vunpack.c.h.b16 %v46
  %v130 = vunpack.c.l.b16 %v47
  %v131 = vunpack.c.h.b16 %v47
  %v132 = vunpack.c.l.b16 %v48
  %v133 = vunpack.c.h.b16 %v48
  %v134 = vunpack.c.l.b16 %v49
  %v135 = vunpack.c.h.b16 %v49
  %v136 = vunpack.c.l.b16 %v50
  %v137 = vunpack.c.h.b16 %v50
  %v138 = vunpack.c.l.b16 %v51
  %v139 = vunpack.c.h.b16 %v51
  %v140 = vunpack.c.l.b16 %v52
  %v141 = vunpack.c.h.b16 %v52
  %v142 = vunpack.c.l.b16 %v53
  %v143 = vunpack.c.h.b16 %v53
  %v144 = vunpack.c.l.b16 %v54
  %v145 = vunpack.c.h.b16 %v54
  %v146 = vunpack.c.l.b16 %v55
  %v147 = vunpack.c.h.b16 %v55
  %v148 = vunpack.c.l.b16 %v56
  %v149 = vunpack.c.h.b16 %v56
  %v150 = vunpack.c.l.b16 %v57
  %v151 = vunpack.c.h.b16 %v57
  %v152 = vunpack.c.l.b16 %v58
  %v153 = vunpack.c.h.b16 %v58
  %v154 = vunpack.c.l.b16 %v59
  %v155 = vunpack.c.h.b16 %v59
  %v156 = vunpack.c.l.b16 %v60
  %v157 = vunpack.c.h.b16 %v60
  %v158 = vunpack.c.l.b16 %v61
  %v159 = vunpack.c.h.b16 %v61
  %v160 = vunpack.c.l.b16 %v62
  %v161 = vunpack.c.h.b16 %v62
  %v162 = vunpack.c.l.b16 %v63
  %v163 = vunpack.c.h.b16 %v63
  %v164 = vunpack.c.l.b16 %v64
  %v165 = vunpack.c.h.b16 %v64
  %v166 = vunpack.c.l.b16 %v65
  %v167 = vunpack.c.h.b16 %v65
  %v168 = vunpack.c.l.b16 %v66
  %v169 = vunpack.c.h.b16 %v66
  %v170 = vpack.c.b16 %v108, %v106
  %v171 = vpack.c.b16 %v109, %v107
  %v172 = vpack.c.b16 %v112, %v110
  %v173 = vpack.c.b16 %v113, %v111
  %v174 = vpack.c.b16 %v116, %v114
  %v175 = vpack.c.b16 %v117, %v115
  %v176 = vpack.c.b16 %v120, %v118
  %v177 = vpack.c.b16 %v121, %v119
  %v178 = vpack.c.b16 %v124, %v122
  %v179 = vpack.c.b16 %v125, %v123
  %v180 = vpack.c.b16 %v128, %v126
  %v181 = vpack.c.b16 %v129, %v127
  %v182 = vpack.c.b16 %v132, %v130
  %v183 = vpack.c.b16 %v133, %v131
  %v184 = vpack.c.b16 %v136, %v134
  %v185 = vpack.c.b16 %v137, %v135
  %v186 = vpack.c.b16 %v140, %v138
  %v187 = vpack.c.b16 %v141, %v139
  %v188 = vpack.c.b16 %v144, %v142
  %v189 = vpack.c.b16 %v145, %v143
  %v190 = vpack.c.b16 %v148, %v146
  %v191 = vpack.c.b16 %v149, %v147
  %v192 = vpack.c.b16 %v152, %v150
  %v193 = vpack.c.b16 %v153, %v151
  %v194 = vpack.c.b16 %v156, %v154
  %v195 = vpack.c.b16 %v157, %v155
  %v196 = vpack.c.b16 %v160, %v158
  %v197 = vpack.c.b16 %v161, %v159
  %v198 = vpack.c.b16 %v164, %v162
  %v199 = vpack.c.b16 %v165, %v163
  %v200 = vpack.c.b16 %v168, %v166
  %v201 = vpack.c.b16 %v169, %v167
  %234 = vmatpush.bf16.msra.mxu0 %v184
  %235 = vmatpush.bf16.msra.mxu0 %v182
  %236 = vmatpush.bf16.msra.mxu0 %v180
  %237 = vmatpush.bf16.msra.mxu0 %v178
  %238 = vmatpush.bf16.msra.mxu0 %v176
  %239 = vmatpush.bf16.msra.mxu0 %v174
  %240 = vmatpush.bf16.msra.mxu0 %v172
  %241 = vmatpush.bf16.msra.mxu0 %v170
  %242 = vmatmul.bf16.gmra.mxu0 %v70
  %v243 = vpop.f32.mrf.mxu0
  %v244 = vadd.f32 0.0, %v243
  %v245 = vpop.f32.mrf.mxu0
  %246 = vdwg.mxu0
  %247 = vmatpush.bf16.msra.mxu0 %v200
  %248 = vmatpush.bf16.msra.mxu0 %v198
  %249 = vmatpush.bf16.msra.mxu0 %v196
  %250 = vmatpush.bf16.msra.mxu0 %v194
  %251 = vmatpush.bf16.msra.mxu0 %v192
  %252 = vmatpush.bf16.msra.mxu0 %v190
  %253 = vmatpush.bf16.msra.mxu0 %v188
  %254 = vmatpush.bf16.msra.mxu0 %v186
  %255 = vmatmul.bf16.gmra.mxu0 %v71
  %v256 = vpop.f32.mrf.mxu0
  %v257 = vadd.f32 %v244, %v256
  %v258 = vpop.f32.mrf.mxu0
  %259 = vdwg.mxu0
  %260 = vmatpush.bf16.msra.mxu0 %v185
  %261 = vmatpush.bf16.msra.mxu0 %v183
  %262 = vmatpush.bf16.msra.mxu0 %v181
  %263 = vmatpush.bf16.msra.mxu0 %v179
  %264 = vmatpush.bf16.msra.mxu0 %v177
  %265 = vmatpush.bf16.msra.mxu0 %v175
  %266 = vmatpush.bf16.msra.mxu0 %v173
  %267 = vmatpush.bf16.msra.mxu0 %v171
  %268 = vmatmul.bf16.gmra.mxu0 %v70
  %v269 = vpop.f32.mrf.mxu0
  %v270 = vadd.f32 0.0, %v269
  %v271 = vpop.f32.mrf.mxu0
  %272 = vdwg.mxu0
  %273 = vmatpush.bf16.msra.mxu0 %v201
  %274 = vmatpush.bf16.msra.mxu0 %v199
  %275 = vmatpush.bf16.msra.mxu0 %v197
  %276 = vmatpush.bf16.msra.mxu0 %v195
  %277 = vmatpush.bf16.msra.mxu0 %v193
  %278 = vmatpush.bf16.msra.mxu0 %v191
  %279 = vmatpush.bf16.msra.mxu0 %v189
  %280 = vmatpush.bf16.msra.mxu0 %v187
  %281 = vmatmul.bf16.gmra.mxu0 %v71
  %v282 = vpop.f32.mrf.mxu0
  %v283 = vadd.f32 %v270, %v282
  %v284 = vpop.f32.mrf.mxu0
  %285 = vdwg.mxu0
  %v286 = vadd.f32 %v32, %v257
  %v287 = vadd.f32 %v33, %v283
  %288 = vst [vmem:[#allocation2] sm:$0xff] %v286
  %289 = vst [vmem:[#allocation2 + $0x8] sm:$0xff] %v287
  // Predicated region
  $region34: #{tpu_custom_call.1} parent=0 // pred_check
    %p290 = pneg %p26
  $region35: #{tpu_custom_call.1} parent=0 // pred_check_branch
    %292 = sbr.rel (%p290) target = $region37
  $region36: #{tpu_custom_call.1} parent=0 // pred_region
    %v293 = vld [vmem:[#allocation2] sm:$0xff]
    %v294 = vld [vmem:[#allocation2 + $0x8] sm:$0xff]
    %v295 = vld [vmem:[%s2] sm:$0x3]
    %v297 = vperm.slane %v295, 0
    %v298 = vperm.slane %v295, 1
    %v301 = vadd.f32 %v293, %v297
    %v302 = vadd.f32 %v294, %v298
    %v303 = vmax.f32 %v301, 0.0
    %v304 = vmax.f32 %v302, 0.0
    %v305 = vld [vmem:[%s3] sm:$0xff]
    %v306 = vld [vmem:[%s3 + $0x8] sm:$0xff]
    %v307 = vld [vmem:[%s3 + $0x10] sm:$0xff]
    %v308 = vld [vmem:[%s3 + $0x18] sm:$0xff]
    %v309 = vld [vmem:[%s3 + $0x20] sm:$0xff]
    %v310 = vld [vmem:[%s3 + $0x28] sm:$0xff]
    %v311 = vld [vmem:[%s3 + $0x30] sm:$0xff]
    %v312 = vld [vmem:[%s3 + $0x38] sm:$0xff]
    %v313 = vld [vmem:[%s3 + $0x40] sm:$0xff]
    %v314 = vld [vmem:[%s3 + $0x48] sm:$0xff]
    %v315 = vld [vmem:[%s3 + $0x50] sm:$0xff]
    %v316 = vld [vmem:[%s3 + $0x58] sm:$0xff]
    %v317 = vld [vmem:[%s3 + $0x60] sm:$0xff]
    %v318 = vld [vmem:[%s3 + $0x68] sm:$0xff]
    %v319 = vld [vmem:[%s3 + $0x70] sm:$0xff]
    %v320 = vld [vmem:[%s3 + $0x78] sm:$0xff]
    %v321 = vld [vmem:[%s3 + $0x80] sm:$0xff]
    %v322 = vld [vmem:[%s3 + $0x88] sm:$0xff]
    %v323 = vld [vmem:[%s3 + $0x90] sm:$0xff]
    %v324 = vld [vmem:[%s3 + $0x98] sm:$0xff]
    %v325 = vld [vmem:[%s3 + $0xa0] sm:$0xff]
    %v326 = vld [vmem:[%s3 + $0xa8] sm:$0xff]
    %v327 = vld [vmem:[%s3 + $0xb0] sm:$0xff]
    %v328 = vld [vmem:[%s3 + $0xb8] sm:$0xff]
    %v329 = vld [vmem:[%s3 + $0xc0] sm:$0xff]
    %v330 = vld [vmem:[%s3 + $0xc8] sm:$0xff]
    %v331 = vld [vmem:[%s3 + $0xd0] sm:$0xff]
    %v332 = vld [vmem:[%s3 + $0xd8] sm:$0xff]
    %v333 = vld [vmem:[%s3 + $0xe0] sm:$0xff]
    %v334 = vld [vmem:[%s3 + $0xe8] sm:$0xff]
    %v335 = vld [vmem:[%s3 + $0xf0] sm:$0xff]
    %v336 = vld [vmem:[%s3 + $0xf8] sm:$0xff]
    %v337 = vld [vmem:[%s4] sm:$0x1]
    %v339 = vperm.slane %v337, 0
    %341 = vmatpush.msra.mxu0 %v320
    %342 = vmatpush.msra.mxu0 %v319
    %343 = vmatpush.msra.mxu0 %v318
    %344 = vmatpush.msra.mxu0 %v317
    %345 = vmatpush.msra.mxu0 %v316
    %346 = vmatpush.msra.mxu0 %v315
    %347 = vmatpush.msra.mxu0 %v314
    %348 = vmatpush.msra.mxu0 %v313
    %349 = vmatpush.msra.mxu0 %v312
    %350 = vmatpush.msra.mxu0 %v311
    %351 = vmatpush.msra.mxu0 %v310
    %352 = vmatpush.msra.mxu0 %v309
    %353 = vmatpush.msra.mxu0 %v308
    %354 = vmatpush.msra.mxu0 %v307
    %355 = vmatpush.msra.mxu0 %v306
    %356 = vmatpush.msra.mxu0 %v305
    %357 = vmatmul.f32.gmra.mxu0 %v303
    %v358 = vpop.f32.mrf.mxu0
    %v359 = vadd.f32 %v339, %v358
    %360 = vdwg.mxu0
    %361 = vmatpush.msra.mxu0 %v336
    %362 = vmatpush.msra.mxu0 %v335
    %363 = vmatpush.msra.mxu0 %v334
    %364 = vmatpush.msra.mxu0 %v333
    %365 = vmatpush.msra.mxu0 %v332
    %366 = vmatpush.msra.mxu0 %v331
    %367 = vmatpush.msra.mxu0 %v330
    %368 = vmatpush.msra.mxu0 %v329
    %369 = vmatpush.msra.mxu0 %v328
    %370 = vmatpush.msra.mxu0 %v327
    %371 = vmatpush.msra.mxu0 %v326
    %372 = vmatpush.msra.mxu0 %v325
    %373 = vmatpush.msra.mxu0 %v324
    %374 = vmatpush.msra.mxu0 %v323
    %375 = vmatpush.msra.mxu0 %v322
    %376 = vmatpush.msra.mxu0 %v321
    %377 = vmatmul.f32.gmra.mxu0 %v304
    %v378 = vpop.f32.mrf.mxu0
    %v379 = vadd.f32 %v359, %v378
    %380 = vdwg.mxu0
    %v381 = vmax.f32 %v379, 0.0
    %v382 = vld [vmem:[%s5] sm:$0xff]
    %v383 = vld [vmem:[%s5 + $0x8] sm:$0xff]
    %v384 = vld [vmem:[%s5 + $0x10] sm:$0xff]
    %v385 = vld [vmem:[%s5 + $0x18] sm:$0xff]
    %v386 = vld [vmem:[%s5 + $0x20] sm:$0xff]
    %v387 = vld [vmem:[%s5 + $0x28] sm:$0xff]
    %v388 = vld [vmem:[%s5 + $0x30] sm:$0xff]
    %v389 = vld [vmem:[%s5 + $0x38] sm:$0xff]
    %v390 = vld [vmem:[%s6] sm:$0x1]
    %v392 = vperm.slane %v390, 0
    %vm394 = vcmask 523264
    %v396 = vsel %vm394, %v381, 0
    %398 = vmatpush.msra.mxu0 0.0
    %399 = vmatpush.msra.mxu0 0.0
    %400 = vmatpush.msra.mxu0 0.0
    %401 = vmatpush.msra.mxu0 0.0
    %402 = vmatpush.msra.mxu0 0.0
    %403 = vmatpush.msra.mxu0 0.0
    %404 = vmatpush.msra.mxu0 0.0
    %405 = vmatpush.msra.mxu0 0.0
    %406 = vmatpush.msra.mxu0 %v389
    %407 = vmatpush.msra.mxu0 %v388
    %408 = vmatpush.msra.mxu0 %v387
    %409 = vmatpush.msra.mxu0 %v386
    %410 = vmatpush.msra.mxu0 %v385
    %411 = vmatpush.msra.mxu0 %v384
    %412 = vmatpush.msra.mxu0 %v383
    %413 = vmatpush.msra.mxu0 %v382
    %414 = vmatmul.f32.gmra.mxu0 %v396
    %v415 = vpop.f32.mrf.mxu0
    %v416 = vadd.f32 %v392, %v415
    %417 = vdwg.mxu0
    %vm418 = vcmask 31744
    %v419 = vsel %vm418, %v416, -inf
    %420 = vmax.xlane.f32.xlu0 %v419
    %v421 = vpop.xlane.xlu0 %420
    %v422 = vsub.f32 %v416, %v421
    %v423 = vmul.f32 %v422, 1.442695
    %v424 = vpow.pop %v423
    %v425 = vsel %vm418, %v424, 0.0
    %426 = vadd.xlane.f32.xlu0 %v425
    %v427 = vpop.xlane.xlu0 %426
    %v428 = vrcp.pop %v427
    %v429 = vmul.f32 %v427, %v428
    %v430 = vsub.f32 1.0, %v429
    %v431 = vmul.f32 %v428, %v430
    %v432 = vadd.f32 %v428, %v431
    %vm433 = vweird.f32 %v427
    %vm434 = vweird.f32 %v428
    %vm435 = vmor %vm433, %vm434
    %v436 = vsel %vm435, %v428, %v432
    %v437 = vand.u32 2147483647, %v427
    %vm438 = vcmp.eq.f32.partialorder %v437, 8.507059e+37
    %v439 = vand.u32 %v427, 2147483648
    %v440 = vor.u32 1.1754944e-38, %v439
    %v441 = vsel %vm438, %v440, %v436
    %v442 = vmul.f32 %v424, %v441
    %443 = vst.msk [vmem:[%s7] sm:$0xff] %vm418, %v442
  $region37: #{tpu_custom_call.1} parent=0 // pred_fallthru
    _
  // Predicated region
  $region38: #{tpu_custom_call.1} parent=0 // pred_check
    _
  $region39: #{tpu_custom_call.1} parent=0 // pred_check_branch
    %445 = sbr.rel (0) target = $region41
  $region40: #{tpu_custom_call.1} parent=0 // pred_region
    _
  $region41: #{tpu_custom_call.1} parent=0 // pred_fallthru
    _
  // Predicated region
  $region42: #{tpu_custom_call.1} parent=0 // pred_check
    _
  $region43: #{tpu_custom_call.1} parent=0 // pred_check_branch
    %447 = sbr.rel (0) target = $region45
  $region44: #{tpu_custom_call.1} parent=0 // pred_region
    _
  $region45: #{tpu_custom_call.1} parent=0 // pred_fallthru
    _

</llo_original>
